<compile_context>
chip_gen: v6e
topology: v6e:2x2x1
jax: 0.10.0
libtpu: 0.0.40
codegen_flags: <defaults>
</compile_context>

<pallas_src>
import math

import jax
import jax.numpy as jnp
from jax.experimental import pallas as pl
from jax.experimental.pallas import tpu as pltpu


# ---------------------------------------------------------------------------
# Kernel
# ---------------------------------------------------------------------------
def tempnet_kernel(x_ref, w3m_ref, b3_ref, w2_ref, b2_ref, o_ref):
    # x_ref  : (1, C*D, S_TILE) bf16   channel*temporal on sublanes, spatial on lanes
    # w3m_ref: (dout, C*D)      bf16   temporal conv as dense matrix (padding folded in)
    # b3_ref : (1, 1) f32 in SMEM      temporal conv bias (scalar)
    # w2_ref : (OC, dout)       bf16   1x1 classification conv weight
    # b2_ref : (OC, 1)          f32    1x1 classification conv bias
    # o_ref  : (1, OC, S_TILE)  f32
    x2d = x_ref[0]

    # Temporal conv: one MXU matmul contracting over C*D, f32 accumulate.
    t = jnp.dot(w3m_ref[...], x2d, preferred_element_type=jnp.float32)
    # Bias + ReLU (Dropout p=0.0 is identity).
    t = jnp.maximum(t + b3_ref[0, 0], 0.0)
    # 1x1 classification conv == (OC, dout) x (dout, S_TILE) matmul on the MXU.
    # Cast the (VMEM-resident) intermediate to bf16 so the MXU gets a native path.
    y = jnp.dot(w2_ref[...], t.astype(jnp.bfloat16),
                preferred_element_type=jnp.float32) + b2_ref[...]
    o_ref[0] = y.astype(o_ref.dtype)


# ---------------------------------------------------------------------------
# Tiling / VMEM helpers
# ---------------------------------------------------------------------------
def _vmem_capacity_bytes():
    try:
        return int(pltpu.get_tpu_info().vmem_capacity_bytes)
    except Exception:
        return 64 << 20  # conservative (v7x per-TensorCore VMEM)


def _pick_s_tile(S, cd, oc, dout, n_batch, *, x_bytes=2, out_bytes=4,
                 target_block_bytes=8 << 20, stream_budget_bytes=20 << 20,
                 min_grid_steps=4):
    """Lane-tile size: multiple of 128, sized toward target_block_bytes for the
    streamed x block, capped by a total VMEM stream budget, and shrunk so there
    are at least `min_grid_steps` grid steps (keeps both v7x TCs busy)."""
    if S <= 128:
        return S  # full-extent block is always legal

    # Per-lane VMEM footprint: double-buffered x + double-buffered out + f32 temps.
    per_lane = 2 * cd * x_bytes + 2 * oc * out_bytes + (dout + oc) * 4
    max_lanes = min(target_block_bytes // (cd * x_bytes),
                    stream_budget_bytes // per_lane,
                    S)
    s_tile = max(128, (max_lanes // 128) * 128)

    while s_tile > 128 and n_batch * pl.cdiv(S, s_tile) < min_grid_steps:
        s_tile = max(128, ((s_tile // 2) // 128) * 128)
    return s_tile


def _resident_spec(block_shape):
    """Constant-index operand: single-buffer it if this JAX supports Buffered."""
    index_map = lambda n, s: tuple(0 for _ in block_shape)
    if hasattr(pl, "Buffered"):
        try:
            return pl.BlockSpec(block_shape, index_map,
                                pipeline_mode=pl.Buffered(1))
        except TypeError:
            pass
    return pl.BlockSpec(block_shape, index_map)


# ---------------------------------------------------------------------------
# Wrapper
# ---------------------------------------------------------------------------
def tempnet_forward(x, w3, b3, w2, b2, temp_ksz):
    """x: (N, C, D, H, W) float32; returns (N, OC, H, W) matching PyTorch tempnet."""
    N, C, D, H, W = x.shape
    K = temp_ksz
    OC, dout_w2 = w2.shape
    dout = D + 2 - K + 1                 # Conv3d with padding=(1,0,0)
    assert dout_w2 == dout
    S = H * W
    CD = C * D

    # Flatten (C, D) onto the contraction axis and (H, W) onto lanes (free reshape),
    # and stream the activation in bf16 (f32 accumulate in-kernel): the x stream is
    # ~85% of HBM bytes, so this ~halves the bandwidth-bound wall clock.
    x2d = x.reshape(N, CD, S).astype(jnp.bfloat16)

    # Build W3_mat (dout, C*D): row d holds w3[c, k] at column c*D + (d + k - 1);
    # out-of-range taps are dropped, which is exactly the zero temporal padding.
    w3_2d = w3.reshape(C, K).astype(jnp.float32)
    blocks = []
    for c in range(C):
        blk = jnp.zeros((dout, D), jnp.float32)
        for k in range(K):
            blk = blk + w3_2d[c, k] * jnp.eye(dout, D, k=k - 1, dtype=jnp.float32)
        blocks.append(blk)
    w3_mat = jnp.concatenate(blocks, axis=1).astype(jnp.bfloat16)   # (dout, C*D)

    w2_bf = w2.astype(jnp.bfloat16)
    b3_2d = b3.reshape(1, 1).astype(jnp.float32)
    b2_2d = b2.reshape(OC, 1).astype(jnp.float32)

    vmem_cap = _vmem_capacity_bytes()
    s_tile = _pick_s_tile(S, CD, OC, dout, N,
                          stream_budget_bytes=min(20 << 20, vmem_cap // 3))
    grid = (N, pl.cdiv(S, s_tile))       # partial last tile handled by Pallas

    # Scoped-VMEM limit: actual double-buffered footprint + headroom, capped at
    # 75% of physical VMEM (matters on v7x's 64 MiB; v5e/v6e have 128 MiB).
    footprint = (2 * CD * s_tile * 2          # x, double-buffered, bf16
                 + 2 * OC * s_tile * 4        # out, double-buffered, f32
                 + (dout + OC) * s_tile * 4   # f32 temporaries in-kernel
                 + dout * CD * 2 + OC * dout * 2 + OC * 4 + 256)
    vmem_limit = int(min(3 * vmem_cap // 4, max(32 << 20, footprint + (8 << 20))))

    cost = pl.CostEstimate(
        flops=2 * N * S * (CD * dout + dout * OC),
        transcendentals=0,
        bytes_accessed=(2 * N * S * CD          # x stream, bf16
                        + 4 * N * S * OC        # output, f32
                        + 2 * dout * CD + 2 * OC * dout + 4 * OC + 4),
    )

    # TODO(synk): emit the output in bf16 (further ~8% HBM bytes) if downstream
    # tolerates it, and bump the streamed-x BlockSpec to pl.Buffered(3) if a
    # profile shows exposed DMA at tile boundaries.
    out = pl.pallas_call(
        tempnet_kernel,
        out_shape=jax.ShapeDtypeStruct((N, OC, S), jnp.float32),
        grid_spec=pltpu.PrefetchScalarGridSpec(
            num_scalar_prefetch=0,
            grid=grid,
            in_specs=[
                pl.BlockSpec((1, CD, s_tile), lambda n, s: (n, 0, s)),
                _resident_spec((dout, CD)),
                pl.BlockSpec(memory_space=pltpu.MemorySpace.SMEM),
                _resident_spec((OC, dout)),
                _resident_spec((OC, 1)),
            ],
            out_specs=pl.BlockSpec((1, OC, s_tile), lambda n, s: (n, 0, s)),
        ),
        compiler_params=pltpu.CompilerParams(
            dimension_semantics=("parallel", "parallel"),
            vmem_limit_bytes=vmem_limit,
        ),
        cost_estimate=cost,
    )(x2d, w3_mat, b3_2d, w2_bf, b2_2d)

    return out.reshape(N, OC, H, W)


# ---------------------------------------------------------------------------
# Pure-JAX reference (f32, mirrors PyTorch semantics)
# ---------------------------------------------------------------------------
def reference_forward(x, w3, b3, w2, b2, temp_ksz):
    N, C, D, H, W = x.shape
    OC = w2.shape[0]
    dout = D + 2 - temp_ksz + 1
    x_pad = jnp.pad(x, ((0, 0), (0, 0), (1, 1), (0, 0), (0, 0)))
    w3_2d = w3.reshape(C, temp_ksz)
    t = jnp.zeros((N, dout, H, W), jnp.float32)
    for k in range(temp_ksz):
        win = x_pad[:, :, k:k + dout, :, :]              # (N, C, dout, H, W)
        t = t + jnp.einsum('ncdhw,c->ndhw', win, w3_2d[:, k])
    t = t + b3.reshape(())
    t = jax.nn.relu(t)
    y = jnp.einsum('od,ndhw->nohw', w2, t) + b2.reshape(1, OC, 1, 1)
    return y


if __name__ == "__main__":
    # Small, deterministic config (module hardcodes 336x336 spatial; we use 16x16
    # with identical per-pixel semantics).
    N, in_channels, out_channels = 2, 4, 6
    din, temp_ksz = 8, 3
    H = W = 16
    dout = int(math.floor(din + 2 - (temp_ksz - 1) - 1 + 1))

    key = jax.random.PRNGKey(0)
    kx, kw3, kb3, kw2, kb2 = jax.random.split(key, 5)

    x = jax.random.normal(kx, (N, in_channels, din, H, W), jnp.float32)
    # Conv3d(in_channels, 1, (temp_ksz,1,1)) parameters
    w3 = 0.1 * jax.random.normal(kw3, (1, in_channels, temp_ksz, 1, 1), jnp.float32)
    b3 = 0.1 * jax.random.normal(kb3, (1,), jnp.float32)
    # Conv2d(dout, out_channels, 1) parameters
    w2 = 0.1 * jax.random.normal(kw2, (out_channels, dout), jnp.float32)
    b2 = 0.1 * jax.random.normal(kb2, (out_channels,), jnp.float32)

    y = tempnet_forward(x, w3, b3, w2, b2, temp_ksz)
    y = jax.block_until_ready(y)

    y_ref = reference_forward(x, w3, b3, w2, b2, temp_ksz)
    assert y.shape == (N, out_channels, H, W)
    # bf16 activation/weight streaming (f32 accumulate) -> relaxed tolerance vs f32 ref.
    assert jnp.allclose(y, y_ref, atol=3e-2, rtol=3e-2), "mismatch vs reference"

    print("KERNEL_OK")
</pallas_src>

<mosaic_0001>
module attributes {stable_mosaic.version = 11 : i64} {
  func.func @tempnet_kernel(%arg0: i32, %arg1: i32, %arg2: memref<1x32x128xbf16, #tpu.memory_space<vmem>>, %arg3: memref<8x32xbf16, #tpu.memory_space<vmem>>, %arg4: memref<1x1xf32, #tpu.memory_space<smem>>, %arg5: memref<6x8xbf16, #tpu.memory_space<vmem>>, %arg6: memref<6x1xf32, #tpu.memory_space<vmem>>, %arg7: memref<1x6x128xf32, #tpu.memory_space<vmem>>) attributes {dimension_semantics = [#tpu.dimension_semantics<parallel>, #tpu.dimension_semantics<parallel>], iteration_bounds = array<i64: 2, 2>, scalar_prefetch = 0 : i64, scratch_operands = 0 : i64, tpu.core_type = #tpu.core_type<tc>, window_params = [{transform_indices = @transform_0, window_bounds = array<i64: 1, 32, 128>}, {pipeline_mode = #tpu.pipeline_mode<synchronous>, transform_indices = @transform_1, window_bounds = array<i64: 8, 32>}, {transform_indices = @transform_2, window_bounds = array<i64: 1, 1>}, {pipeline_mode = #tpu.pipeline_mode<synchronous>, transform_indices = @transform_3, window_bounds = array<i64: 6, 8>}, {pipeline_mode = #tpu.pipeline_mode<synchronous>, transform_indices = @transform_4, window_bounds = array<i64: 6, 1>}, {transform_indices = @transform_5, window_bounds = array<i64: 1, 6, 128>}]} {
    %c0 = arith.constant 0 : index
    %c0_0 = arith.constant 0 : index
    %c0_1 = arith.constant 0 : index
    %0 = vector.load %arg2[%c0, %c0_0, %c0_1] : memref<1x32x128xbf16, #tpu.memory_space<vmem>>, vector<1x32x128xbf16>
    %1 = vector.shape_cast %0 : vector<1x32x128xbf16> to vector<32x128xbf16>
    %c0_2 = arith.constant 0 : index
    %c0_3 = arith.constant 0 : index
    %2 = vector.load %arg3[%c0_2, %c0_3] : memref<8x32xbf16, #tpu.memory_space<vmem>>, vector<8x32xbf16>
    %cst = arith.constant dense<0.000000e+00> : vector<8x128xf32>
    %3 = tpu.matmul %2, %1, %cst {dimension_numbers = #tpu.dot_dimension_numbers<[1], [0], [0], [1], [0, 0, 1, 1], [], []>} : vector<8x32xbf16>, vector<32x128xbf16>, vector<8x128xf32> -> vector<8x128xf32>
    %c0_4 = arith.constant 0 : index
    %c0_5 = arith.constant 0 : index
    %4 = memref.load %arg4[%c0_4, %c0_5] : memref<1x1xf32, #tpu.memory_space<smem>>
    %5 = vector.broadcast %4 : f32 to vector<8x128xf32>
    %6 = arith.addf %3, %5 : vector<8x128xf32>
    %cst_6 = arith.constant 0.000000e+00 : f32
    %7 = vector.broadcast %cst_6 : f32 to vector<8x128xf32>
    %8 = arith.maximumf %6, %7 : vector<8x128xf32>
    %c0_7 = arith.constant 0 : index
    %c0_8 = arith.constant 0 : index
    %9 = vector.load %arg5[%c0_7, %c0_8] : memref<6x8xbf16, #tpu.memory_space<vmem>>, vector<6x8xbf16>
    %10 = arith.truncf %8 : vector<8x128xf32> to vector<8x128xbf16>
    %cst_9 = arith.constant dense<0.000000e+00> : vector<6x128xf32>
    %11 = tpu.matmul %9, %10, %cst_9 {dimension_numbers = #tpu.dot_dimension_numbers<[1], [0], [0], [1], [0, 0, 1, 1], [], []>} : vector<6x8xbf16>, vector<8x128xbf16>, vector<6x128xf32> -> vector<6x128xf32>
    %c0_10 = arith.constant 0 : index
    %c0_11 = arith.constant 0 : index
    %12 = vector.load %arg6[%c0_10, %c0_11] : memref<6x1xf32, #tpu.memory_space<vmem>>, vector<6x1xf32>
    %13 = vector.broadcast %12 : vector<6x1xf32> to vector<6x128xf32>
    %14 = arith.addf %11, %13 : vector<6x128xf32>
    %c0_12 = arith.constant 0 : index
    %c0_13 = arith.constant 0 : index
    %c0_14 = arith.constant 0 : index
    %15 = vector.load %arg7[%c0_12, %c0_13, %c0_14] : memref<1x6x128xf32, #tpu.memory_space<vmem>>, vector<1x6x128xf32>
    %16 = vector.shape_cast %15 : vector<1x6x128xf32> to vector<6x128xf32>
    %17 = vector.shape_cast %14 : vector<6x128xf32> to vector<1x6x128xf32>
    tpu.vector_store %arg7[%c0_12, %c0_13, %c0_14], %17 {strides = array<i32>} : memref<1x6x128xf32, #tpu.memory_space<vmem>>, vector<1x6x128xf32>,
    return
  }
  func.func @transform_0(%arg0: i32, %arg1: i32) -> (i32, i32, i32) {
    %c0_i32 = arith.constant 0 : i32
    %c0_i32_0 = arith.constant 0 : i32
    return %arg0, %c0_i32, %arg1 : i32, i32, i32
  }
  func.func @transform_1(%arg0: i32, %arg1: i32) -> (i32, i32) {
    %c0_i32 = arith.constant 0 : i32
    %c0_i32_0 = arith.constant 0 : i32
    %c0_i32_1 = arith.constant 0 : i32
    return %c0_i32, %c0_i32_0 : i32, i32
  }
  func.func @transform_2(%arg0: i32, %arg1: i32) -> (i32, i32) {
    %c0_i32 = arith.constant 0 : i32
    %c0_i32_0 = arith.constant 0 : i32
    %c0_i32_1 = arith.constant 0 : i32
    return %c0_i32, %c0_i32_0 : i32, i32
  }
  func.func @transform_3(%arg0: i32, %arg1: i32) -> (i32, i32) {
    %c0_i32 = arith.constant 0 : i32
    %c0_i32_0 = arith.constant 0 : i32
    %c0_i32_1 = arith.constant 0 : i32
    return %c0_i32, %c0_i32_0 : i32, i32
  }
  func.func @transform_4(%arg0: i32, %arg1: i32) -> (i32, i32) {
    %c0_i32 = arith.constant 0 : i32
    %c0_i32_0 = arith.constant 0 : i32
    %c0_i32_1 = arith.constant 0 : i32
    return %c0_i32, %c0_i32_0 : i32, i32
  }
  func.func @transform_5(%arg0: i32, %arg1: i32) -> (i32, i32, i32) {
    %c0_i32 = arith.constant 0 : i32
    %c0_i32_0 = arith.constant 0 : i32
    return %arg0, %c0_i32, %arg1 : i32, i32, i32
  }
}

</mosaic_0001>

<llo_original>
// kernel: tpu_custom_call.1
$region0: #{tpu_custom_call.1}
  #allocation0 [shape = 'u32[]', space=smem, size = 0x4, offset = 0x4, fixed_abs, tag = 'smem constant byte address 0x4 - core index']
  #allocation1 [shape = 'u32[144,128]{1,0:T(1,128)}', space=vmem, size = 0x12000, scoped, tag = 'internal scratch']
  #allocation2 [shape = 'f32[1,1]{1,0:T(1,128)S(6)}', space=smem, size = 0x200, scoped, tag = 'scoped memory for tpu_custom_call.1']
  %s0 = inlined_call_operand.hbm [shape: bf16[2,32,256], index: 0, kind: input, shape index: {}]
  %s1 = inlined_call_operand.vmem [shape: bf16[8,32], index: 1, kind: input, shape index: {}]
  %s2 = inlined_call_operand.<no memory space> [shape: f32[1,1], index: 2, kind: input, shape index: {}]
  %s3 = inlined_call_operand.vmem [shape: bf16[6,8], index: 3, kind: input, shape index: {}]
  %s4 = inlined_call_operand.vmem [shape: f32[6,1], index: 4, kind: input, shape index: {}]
  %s5 = inlined_call_operand.vmem [shape: f32[2,6,256], index: 5, kind: output, shape index: {}]
  %s6 = sld [smem:[#allocation0]]
  $region57: #{tpu_custom_call.1} parent=0
    _
  %s8 = ssub.s32 1, %s6
  %s9 = scalar_select 0, %s8, %s6
  %10 = sst [smem:[#allocation2]] %s2
  $region1: #{tpu_custom_call.1} parent=0
    #allocation3 [shape = 'u8[16384]{0}', space=vmem, size = 0x4000, scoped, tag = 'input window, operand 0']
    #allocation4 [shape = 's32[2]{0}', space=sflag, size = 0x8, scoped, tag = 'scoped memory for tpu_custom_call.1']
    %11 = vsyncpa [#allocation4], 0
    %s12 = scalar_lea.sflag [#allocation4], 1
    %13 = vsyncpa %s12, 0
    loop: start=0, step=1, limit=6
    $region2: #{tpu_custom_call.1} parent=1 // loop_pre_header
      _
    $region3: #{tpu_custom_call.1} parent=1 // loop_header
      %s15 = sphi 0, %s19
      %p16 = scmp.ge.s32.totalorder %s15, 6
      %s22 = sphi 0, %s34
      %s23 = sphi 0, %s30
      %s24 = sphi 0, %s22
      %s25 = sphi 0, %s23
      %s26 = sphi 0, %s24
      %s27 = sphi 0, %s25
      %s39 = sphi 0, %s41
      %s42 = sphi 0, %s39
      %s43 = sphi 0, %s42
      %s59 = sphi 0, %s43
      %s63 = sphi 0, %s63
      %s65 = sphi 0, %s63
      %s66 = sphi 0, %s65
      %s80 = sphi 0, %s66
      %s84 = sphi 0, %s84
      %s86 = sphi 0, %s84
      %s87 = sphi 0, %s86
      %s101 = sphi 0, %s87
      %s105 = sphi 0, %s105
      %s107 = sphi 0, %s105
      %s108 = sphi 0, %s107
      %s122 = sphi 0, %s108
      %s126 = sphi 0, %s126
      %s128 = sphi 0, %s126
      %s129 = sphi 0, %s128
      %s143 = sphi 0, %s129
      %s151 = sphi 0, %s153
      %s154 = sphi 0, %s151
      %s155 = sphi 0, %s154
      %s171 = sphi 0, %s155
    $region4: #{tpu_custom_call.1} parent=1 // loop_header_branch
      %18 = sbr.rel (%p16) target = $region8
    $region5: #{tpu_custom_call.1} parent=1 // loop_body
      %s20 = ssub.s32 %s15, 1
      %s21 = ssub.s32 %s15, 2
      %s28 = sadd.s32 1, %s23
      %p29 = scmp.ge.s32.totalorder %s28, 2
      %s30 = scalar_select %p29, 0, %s28
      %s31 = sadd.s32 1, %s22
      %s32 = scalar_select %p29, %s31, %s22
      %p33 = scmp.ge.s32.totalorder %s32, 2
      %s34 = scalar_select %p33, 0, %s32
      %s35 = ssub.s32 %s22, %s34
      %s36 = ssub.s32 %s23, %s30
      %s37 = sor.u32 %s35, %s36
      %p38 = scmp.eq.s32.totalorder %s37, 0
      %s40 = sadd.s32 %s39, 1
      %s41 = scalar_select %p38, %s39, %s40
      %p44 = pneg %p38
      %p45 = scmp.eq.s32.totalorder %s15, 3
      %p46 = por %p44, %p45
      %p47 = scmp.ne.s32.totalorder %s39, %s42
      %p48 = scmp.eq.s32.totalorder %s15, 0
      %p49 = por %p47, %p48
      %p50 = scmp.ne.s32.totalorder %s39, %s42
      %p51 = scmp.eq.s32.totalorder %s20, 3
      %p52 = por %p50, %p51
      %p53 = scmp.ne.s32.totalorder %s42, %s43
      %p54 = scmp.eq.s32.totalorder %s20, 0
      %p55 = por %p53, %p54
      %p56 = scmp.ne.s32.totalorder %s42, %s43
      %p57 = scmp.eq.s32.totalorder %s21, 3
      %p58 = por %p56, %p57
      %p60 = scmp.ne.s32.totalorder %s43, %s59
      %p61 = scmp.eq.s32.totalorder %s21, 0
      %p62 = por %p60, %p61
      %s64 = sadd.s32 %s63, 1
      %p67 = scmp.eq.s32.totalorder %s15, 3
      %p68 = scmp.ne.s32.totalorder %s63, %s65
      %p69 = scmp.eq.s32.totalorder %s15, 0
      %p70 = por %p68, %p69
      %p71 = scmp.ne.s32.totalorder %s63, %s65
      %p72 = scmp.eq.s32.totalorder %s20, 3
      %p73 = por %p71, %p72
      %p74 = scmp.ne.s32.totalorder %s65, %s66
      %p75 = scmp.eq.s32.totalorder %s20, 0
      %p76 = por %p74, %p75
      %p77 = scmp.ne.s32.totalorder %s65, %s66
      %p78 = scmp.eq.s32.totalorder %s21, 3
      %p79 = por %p77, %p78
      %p81 = scmp.ne.s32.totalorder %s66, %s80
      %p82 = scmp.eq.s32.totalorder %s21, 0
      %p83 = por %p81, %p82
      %s85 = sadd.s32 %s84, 1
      %p88 = scmp.eq.s32.totalorder %s15, 3
      %p89 = scmp.ne.s32.totalorder %s84, %s86
      %p90 = scmp.eq.s32.totalorder %s15, 0
      %p91 = por %p89, %p90
      %p92 = scmp.ne.s32.totalorder %s84, %s86
      %p93 = scmp.eq.s32.totalorder %s20, 3
      %p94 = por %p92, %p93
      %p95 = scmp.ne.s32.totalorder %s86, %s87
      %p96 = scmp.eq.s32.totalorder %s20, 0
      %p97 = por %p95, %p96
      %p98 = scmp.ne.s32.totalorder %s86, %s87
      %p99 = scmp.eq.s32.totalorder %s21, 3
      %p100 = por %p98, %p99
      %p102 = scmp.ne.s32.totalorder %s87, %s101
      %p103 = scmp.eq.s32.totalorder %s21, 0
      %p104 = por %p102, %p103
      %s106 = sadd.s32 %s105, 1
      %p109 = scmp.eq.s32.totalorder %s15, 3
      %p110 = scmp.ne.s32.totalorder %s105, %s107
      %p111 = scmp.eq.s32.totalorder %s15, 0
      %p112 = por %p110, %p111
      %p113 = scmp.ne.s32.totalorder %s105, %s107
      %p114 = scmp.eq.s32.totalorder %s20, 3
      %p115 = por %p113, %p114
      %p116 = scmp.ne.s32.totalorder %s107, %s108
      %p117 = scmp.eq.s32.totalorder %s20, 0
      %p118 = por %p116, %p117
      %p119 = scmp.ne.s32.totalorder %s107, %s108
      %p120 = scmp.eq.s32.totalorder %s21, 3
      %p121 = por %p119, %p120
      %p123 = scmp.ne.s32.totalorder %s108, %s122
      %p124 = scmp.eq.s32.totalorder %s21, 0
      %p125 = por %p123, %p124
      %s127 = sadd.s32 %s126, 1
      %p130 = scmp.eq.s32.totalorder %s15, 3
      %p131 = scmp.ne.s32.totalorder %s126, %s128
      %p132 = scmp.eq.s32.totalorder %s15, 0
      %p133 = por %p131, %p132
      %p134 = scmp.ne.s32.totalorder %s126, %s128
      %p135 = scmp.eq.s32.totalorder %s20, 3
      %p136 = por %p134, %p135
      %p137 = scmp.ne.s32.totalorder %s128, %s129
      %p138 = scmp.eq.s32.totalorder %s20, 0
      %p139 = por %p137, %p138
      %p140 = scmp.ne.s32.totalorder %s128, %s129
      %p141 = scmp.eq.s32.totalorder %s21, 3
      %p142 = por %p140, %p141
      %p144 = scmp.ne.s32.totalorder %s129, %s143
      %p145 = scmp.eq.s32.totalorder %s21, 0
      %p146 = por %p144, %p145
      %s147 = ssub.s32 %s22, %s34
      %s148 = ssub.s32 %s23, %s30
      %s149 = sor.u32 %s147, %s148
      %p150 = scmp.eq.s32.totalorder %s149, 0
      %s152 = sadd.s32 %s151, 1
      %s153 = scalar_select %p150, %s151, %s152
      %p156 = pneg %p150
      %p157 = scmp.eq.s32.totalorder %s15, 3
      %p158 = por %p156, %p157
      %p159 = scmp.ne.s32.totalorder %s151, %s154
      %p160 = scmp.eq.s32.totalorder %s15, 0
      %p161 = por %p159, %p160
      %p162 = scmp.ne.s32.totalorder %s151, %s154
      %p163 = scmp.eq.s32.totalorder %s20, 3
      %p164 = por %p162, %p163
      %p165 = scmp.ne.s32.totalorder %s154, %s155
      %p166 = scmp.eq.s32.totalorder %s20, 0
      %p167 = por %p165, %p166
      %p168 = scmp.ne.s32.totalorder %s154, %s155
      %p169 = scmp.eq.s32.totalorder %s21, 3
      %p170 = por %p168, %p169
      %p172 = scmp.ne.s32.totalorder %s155, %s171
      %p173 = scmp.eq.s32.totalorder %s21, 0
      %p174 = por %p172, %p173
      %p175 = scmp.le.s32.totalorder 1, %s15
      %p176 = scmp.lt.s32.totalorder %s15, 5
      %p177 = pnand %p175, %p176
      %p178 = pneg %p177
      // Predicated region
      $region9: #{tpu_custom_call.1} parent=5 // pred_check
        _
      $region10: #{tpu_custom_call.1} parent=5 // pred_check_branch
        %180 = sbr.rel (%p177) target = $region12
      $region11: #{tpu_custom_call.1} parent=5 // pred_region
        %s181 = ssub.s32 %s15, 1
        // Predicated region
        $region13: #{tpu_custom_call.1} parent=11 // pred_check
          %p182 = pneg %p76
        $region14: #{tpu_custom_call.1} parent=11 // pred_check_branch
          %184 = sbr.rel (%p182) target = $region16
        $region15: #{tpu_custom_call.1} parent=11 // pred_region
          _
        $region16: #{tpu_custom_call.1} parent=11 // pred_fallthru
          _
        // Predicated region
        $region17: #{tpu_custom_call.1} parent=11 // pred_check
          %p185 = pneg %p97
        $region18: #{tpu_custom_call.1} parent=11 // pred_check_branch
          %187 = sbr.rel (%p185) target = $region20
        $region19: #{tpu_custom_call.1} parent=11 // pred_region
          _
        $region20: #{tpu_custom_call.1} parent=11 // pred_fallthru
          _
        // Predicated region
        $region21: #{tpu_custom_call.1} parent=11 // pred_check
          %p188 = pneg %p118
        $region22: #{tpu_custom_call.1} parent=11 // pred_check_branch
          %190 = sbr.rel (%p188) target = $region24
        $region23: #{tpu_custom_call.1} parent=11 // pred_region
          _
        $region24: #{tpu_custom_call.1} parent=11 // pred_fallthru
          _
        // Predicated region
        $region25: #{tpu_custom_call.1} parent=11 // pred_check
          %p191 = pneg %p139
        $region26: #{tpu_custom_call.1} parent=11 // pred_check_branch
          %193 = sbr.rel (%p191) target = $region28
        $region27: #{tpu_custom_call.1} parent=11 // pred_region
          _
        $region28: #{tpu_custom_call.1} parent=11 // pred_fallthru
          _
      $region12: #{tpu_custom_call.1} parent=5 // pred_fallthru
        _
      %p194 = scmp.lt.s32.totalorder %s15, 4
      // Predicated region
      $region29: #{tpu_custom_call.1} parent=5 // pred_check
        %p195 = pneg %p194
      $region30: #{tpu_custom_call.1} parent=5 // pred_check_branch
        %197 = sbr.rel (%p195) target = $region32
      $region31: #{tpu_custom_call.1} parent=5 // pred_region
        // Predicated region
        $region33: #{tpu_custom_call.1} parent=31 // pred_check
          %p198 = pneg %p49
        $region34: #{tpu_custom_call.1} parent=31 // pred_check_branch
          %200 = sbr.rel (%p198) target = $region36
        $region35: #{tpu_custom_call.1} parent=31 // pred_region
          %s201 = sand.u32 %s39, 1
          %s202 = scalar_lea.sflag [#allocation4], %s201
          %s203 = sand.u32 %s39, 1
          %s204 = smul.addr %s203, 16
          %s205 = scalar_lea.vmem [#allocation3], %s204
          %s207 = ssub.s32 256, 256
          %208 = vsyncadd %s202, %s207
          %s209 = smul.addr %s22, 8
          %s210 = sadd.s32 %s23, %s209
          %s211 = smul.addr %s210, 64
          %s212 = scalar_lea.hbm %s0, %s211
          %s213 = sshll.u32 %s205, 4
          %s214 = int_to_ptr.vmem [resolvable:$true] %s213
          %219 = dma.hbm_to_vmem [thread:$0]  %s212, 256, %s214, %s202, 128, 64, 4
        $region36: #{tpu_custom_call.1} parent=31 // pred_fallthru
          _
      $region32: #{tpu_custom_call.1} parent=5 // pred_fallthru
        _
      %p220 = scmp.le.s32.totalorder 1, %s15
      %p221 = scmp.lt.s32.totalorder %s15, 5
      %p222 = pnand %p220, %p221
      %p223 = pneg %p222
      // Predicated region
      $region37: #{tpu_custom_call.1} parent=5 // pred_check
        _
      $region38: #{tpu_custom_call.1} parent=5 // pred_check_branch
        %225 = sbr.rel (%p222) target = $region40
      $region39: #{tpu_custom_call.1} parent=5 // pred_region
        %s226 = ssub.s32 %s15, 1
        %s227 = sand.u32 %s42, 1
        %s228 = scalar_lea.sflag [#allocation4], %s227
        %s229 = sand.u32 %s42, 1
        %s230 = smul.addr %s229, 16
        %s231 = scalar_lea.vmem [#allocation3], %s230
        // Predicated region
        $region41: #{tpu_custom_call.1} parent=39 // pred_check
          %p232 = pneg %p55
        $region42: #{tpu_custom_call.1} parent=39 // pred_check_branch
          %234 = sbr.rel (%p232) target = $region44
        $region43: #{tpu_custom_call.1} parent=39 // pred_region
          %235 = dma.done %s228, 256
        $region44: #{tpu_custom_call.1} parent=39 // pred_fallthru
          _
        %s236 = sand.u32 %s42, 1
        %s237 = scalar_lea.sflag [#allocation4], %s236
        %s238 = sand.u32 %s42, 1
        %s239 = smul.addr %s238, 16
        %s240 = scalar_lea.vmem [#allocation3], %s239
        %p241 = pneg %p55
        %p242 = pneg %p52
        %p243 = pneg %p76
        %p244 = pneg %p73
        %p245 = pneg %p97
        %p246 = pneg %p94
        %p247 = pneg %p118
        %p248 = pneg %p115
        %p249 = pneg %p139
        %p250 = pneg %p136
        %p251 = pneg %p167
        %p252 = pneg %p164
        %p253 = scmp.lt.s32.totalorder %s24, 1
        %s254 = scalar_select %p253, %s24, 1
        %p255 = scmp.lt.s32.totalorder %s25, 1
        %s256 = scalar_select %p255, %s25, 1
        %s257 = smul.addr %s254, 2
        %s258 = sadd.s32 %s256, %s257
        %s259 = smul.addr %s258, 8
        %s260 = scalar_lea.vmem %s5, %s259
        %p261 = scmp.lt.s32.totalorder %s24, 1
        %s262 = scalar_select %p261, %s24, 1
        %p263 = scmp.lt.s32.totalorder %s25, 1
        %s264 = scalar_select %p263, %s25, 1
        %s265 = smul.addr %s262, 2
        %s266 = sadd.s32 %s264, %s265
        %s267 = smul.addr %s266, 8
        %s268 = scalar_lea.vmem %s5, %s267
        %v270 = vld [vmem:[%s231] sm:$0xf]
        %v271 = vld [vmem:[%s231 + $0x4] sm:$0xf]
        %v272 = vld [vmem:[%s231 + $0x8] sm:$0xf]
        %v273 = vld [vmem:[%s231 + $0xc] sm:$0xf]
        %v274 = vld [vmem:[%s1] sm:$0xf]
        %s275 = sld [smem:[#allocation2]]
        %v276 = vstv %s275
        %v281 = vunpack.c.l.b16 %v270
        %v282 = vunpack.c.l.b16 %v271
        %v283 = vunpack.c.l.b16 %v272
        %v284 = vunpack.c.l.b16 %v273
        %v285 = vpack.c.b16 %v282, %v281
        %v286 = vpack.c.b16 %v284, %v283
        %vm289 = vcmask 261120
        %v291 = vsel %vm289, %v274, 0
        %293 = vmatprep.subr.bf16.mxu0 0
        %294 = vmatpush1.bf16.msra.mxu0 0
        %295 = vmatprep.subr.bf16.mxu0 0
        %296 = vmatpush1.bf16.msra.mxu0 0
        %297 = vmatprep.subr.bf16.mxu0 0
        %298 = vmatpush1.bf16.msra.mxu0 0
        %299 = vmatprep.subr.bf16.mxu0 0
        %300 = vmatpush1.bf16.msra.mxu0 0
        %301 = vmatprep.subr.bf16.mxu0 0
        %302 = vmatpush1.bf16.msra.mxu0 0
        %303 = vmatprep.subr.bf16.mxu0 0
        %304 = vmatpush1.bf16.msra.mxu0 0
        %305 = vmatprep.subr.bf16.mxu0 0
        %306 = vmatpush1.bf16.msra.mxu0 %v286
        %307 = vmatprep.subr.bf16.mxu0 0
        %308 = vmatpush1.bf16.msra.mxu0 %v285
        %309 = vmatprep.subr.bf16.mxu0 0
        %310 = vmatpush2.bf16.msra.mxu0 0
        %311 = vmatprep.subr.bf16.mxu0 0
        %312 = vmatpush2.bf16.msra.mxu0 0
        %313 = vmatprep.subr.bf16.mxu0 0
        %314 = vmatpush2.bf16.msra.mxu0 0
        %315 = vmatprep.subr.bf16.mxu0 0
        %316 = vmatpush2.bf16.msra.mxu0 0
        %317 = vmatprep.subr.bf16.mxu0 0
        %318 = vmatpush2.bf16.msra.mxu0 0
        %319 = vmatprep.subr.bf16.mxu0 0
        %320 = vmatpush2.bf16.msra.mxu0 0
        %321 = vmatprep.subr.bf16.mxu0 0
        %322 = vmatpush2.bf16.msra.mxu0 0
        %323 = vmatprep.subr.bf16.mxu0 0
        %324 = vmatpush2.bf16.msra.mxu0 0
        %325 = vmatprep.mubr.bf16.mxu0 0
        %326 = vmatmul.mubr.bf16.gmra.mxu0 %v291
        %v327 = vpop.f32.mrf.mxu0
        %v328 = vadd.f32 %v276, %v327
        %v329 = vpop.f32.mrf.mxu0
        %v330 = vpop.f32.mrf.mxu0
        %v331 = vpop.f32.mrf.mxu0
        %332 = vdwg.mxu0
        %v333 = vmax.f32 %v328, 0.0
        %v334 = vld [vmem:[%s3] sm:$0x7]
        %v335 = vpack.c.bf16 %v333, %v333
        %v336 = vld [vmem:[%s4] sm:$0x3f]
        %338 = vset.pattern.permute.xlu0 0
        %339 = vperm.xlu0 %338, %v336
        %v340 = vpop.permute.xlu0 %339
        %vm342 = vcmask 64512
        %v344 = vsel %vm342, %v334, 0
        %vm346 = vcmask 1043456
        %v348 = vsel %vm346, %v335, 0
        %350 = vmatprep.subr.bf16.mxu0 0
        %351 = vmatpush1.bf16.msra.mxu0 0
        %352 = vmatprep.subr.bf16.mxu0 0
        %353 = vmatpush1.bf16.msra.mxu0 0
        %354 = vmatprep.subr.bf16.mxu0 0
        %355 = vmatpush1.bf16.msra.mxu0 0
        %356 = vmatprep.subr.bf16.mxu0 0
        %357 = vmatpush1.bf16.msra.mxu0 0
        %358 = vmatprep.subr.bf16.mxu0 0
        %359 = vmatpush1.bf16.msra.mxu0 0
        %360 = vmatprep.subr.bf16.mxu0 0
        %361 = vmatpush1.bf16.msra.mxu0 0
        %362 = vmatprep.subr.bf16.mxu0 0
        %363 = vmatpush1.bf16.msra.mxu0 0
        %364 = vmatprep.subr.bf16.mxu0 0
        %365 = vmatpush1.bf16.msra.mxu0 %v348
        %366 = vmatprep.subr.bf16.mxu0 0
        %367 = vmatpush2.bf16.msra.mxu0 0
        %368 = vmatprep.subr.bf16.mxu0 0
        %369 = vmatpush2.bf16.msra.mxu0 0
        %370 = vmatprep.subr.bf16.mxu0 0
        %371 = vmatpush2.bf16.msra.mxu0 0
        %372 = vmatprep.subr.bf16.mxu0 0
        %373 = vmatpush2.bf16.msra.mxu0 0
        %374 = vmatprep.subr.bf16.mxu0 0
        %375 = vmatpush2.bf16.msra.mxu0 0
        %376 = vmatprep.subr.bf16.mxu0 0
        %377 = vmatpush2.bf16.msra.mxu0 0
        %378 = vmatprep.subr.bf16.mxu0 0
        %379 = vmatpush2.bf16.msra.mxu0 0
        %380 = vmatprep.subr.bf16.mxu0 0
        %381 = vmatpush2.bf16.msra.mxu0 0
        %382 = vmatprep.mubr.bf16.mxu0 0
        %383 = vmatmul.mubr.bf16.gmra.mxu0 %v344
        %v384 = vpop.f32.mrf.mxu0
        %v385 = vadd.f32 %v340, %v384
        %v386 = vpop.f32.mrf.mxu0
        %v387 = vpop.f32.mrf.mxu0
        %v388 = vpop.f32.mrf.mxu0
        %389 = vdwg.mxu0
        %390 = vst [vmem:[%s268] sm:$0x3f] %v385
        %p391 = scmp.lt.s32.totalorder %s24, 1
        %s392 = scalar_select %p391, %s24, 1
        %p393 = scmp.lt.s32.totalorder %s25, 1
        %s394 = scalar_select %p393, %s25, 1
        %s395 = smul.addr %s392, 2
        %s396 = sadd.s32 %s394, %s395
        %s397 = smul.addr %s396, 8
        %s398 = scalar_lea.vmem %s5, %s397
        // Predicated region
        $region45: #{tpu_custom_call.1} parent=39 // pred_check
          %p399 = pneg %p164
        $region46: #{tpu_custom_call.1} parent=39 // pred_check_branch
          %401 = sbr.rel (%p399) target = $region48
        $region47: #{tpu_custom_call.1} parent=39 // pred_region
          _
        $region48: #{tpu_custom_call.1} parent=39 // pred_fallthru
          _
      $region40: #{tpu_custom_call.1} parent=5 // pred_fallthru
        _
      %p402 = scmp.le.s32.totalorder 2, %s15
      // Predicated region
      $region49: #{tpu_custom_call.1} parent=5 // pred_check
        %p403 = pneg %p402
      $region50: #{tpu_custom_call.1} parent=5 // pred_check_branch
        %405 = sbr.rel (%p403) target = $region52
      $region51: #{tpu_custom_call.1} parent=5 // pred_region
        %s406 = ssub.s32 %s15, 2
        // Predicated region
        $region53: #{tpu_custom_call.1} parent=51 // pred_check
          %p407 = pneg %p170
        $region54: #{tpu_custom_call.1} parent=51 // pred_check_branch
          %409 = sbr.rel (%p407) target = $region56
        $region55: #{tpu_custom_call.1} parent=51 // pred_region
          %p410 = scmp.lt.s32.totalorder %s26, 1
          %s411 = scalar_select %p410, %s26, 1
          %p412 = scmp.lt.s32.totalorder %s27, 1
          %s413 = scalar_select %p412, %s27, 1
          %s414 = smul.addr %s411, 2
          %s415 = sadd.s32 %s413, %s414
          %s416 = smul.addr %s415, 8
          %s417 = scalar_lea.vmem %s5, %s416
        $region56: #{tpu_custom_call.1} parent=51 // pred_fallthru
          _
      $region52: #{tpu_custom_call.1} parent=5 // pred_fallthru
        _
    $region6: #{tpu_custom_call.1} parent=1 // loop_footer
      %s19 = sadd.s32 1, %s15
    $region7: #{tpu_custom_call.1} parent=1 // loop_footer_branch
      %14 = sbr.rel target = $region3
    $region8: #{tpu_custom_call.1} parent=1 // loop_exit
      _
    %418 = vsyncpa [#allocation4], 1
    %s419 = scalar_lea.sflag [#allocation4], 1
    %420 = vsyncpa %s419, 1

</llo_original>
